<compile_context>
chip_gen: v7x
topology: tpu7x:2x2x1
jax: 0.10.0
libtpu: 0.0.40
codegen_flags: <defaults>
</compile_context>

<pallas_src>
import functools

import jax
import jax.numpy as jnp
from jax.experimental import pallas as pl
from jax.experimental.pallas import tpu as pltpu


def _round_up(x, m):
    return (x + m - 1) // m * m


def classifier_kernel(x_ref, w1_ref, b1_ref, w2_ref, b2_ref, w3_ref, b3_ref,
                      cls_ref, hid_ref):
    # x_ref: (TB, F) bf16 ; weights bf16 ; biases f32 ; outputs f32.
    x = x_ref[...]

    a1 = jnp.dot(x, w1_ref[...], preferred_element_type=jnp.float32)
    a1 = a1 + b1_ref[...]

    cls_last = jnp.dot(a1.astype(w2_ref.dtype), w2_ref[...],
                       preferred_element_type=jnp.float32)
    cls_last = cls_last + b2_ref[...]
    hid_ref[...] = cls_last.astype(hid_ref.dtype)

    logits = jnp.dot(cls_last.astype(w3_ref.dtype), w3_ref[...],
                     preferred_element_type=jnp.float32)
    logits = logits + b3_ref[...]          # pad columns carry bias = -1e30

    # softmax over dim=1 (lane axis), numerically stabilized; padded columns
    # produce exp(-huge) == 0 so no extra masking is needed.
    m = jnp.max(logits, axis=1, keepdims=True)
    e = jnp.exp(logits - m)
    denom = jnp.sum(e, axis=1, keepdims=True)
    cls_ref[...] = (e * pl.reciprocal(denom, approx=True)).astype(cls_ref.dtype)


def classifier_forward(h, params, *, tb_max=512):
    """h: (B, n_times, n_latent) or (B, F). Returns (class_, cls_last_layer_).

    tb_max: batch tile upper bound. 512 is a conservative default that fits
    v7x / v5e scoped VMEM comfortably; raise to 2048-4096 on v6e if desired.
    """
    w1, b1, w2, b2, w3, b3 = params          # weights stored (in, out)
    F = w1.shape[0]
    h1 = w1.shape[1]
    h2 = w2.shape[1]
    n_classes = w3.shape[1]

    h2p = _round_up(h2, 128)                 # lane-dense hidden output
    cp = _round_up(n_classes, 128)           # lane-dense class output

    x = h.reshape(-1, F)
    B = x.shape[0]
    TB = min(tb_max, _round_up(B, 8))        # sublane-aligned batch tile
    B_pad = _round_up(B, TB)
    grid = (B_pad // TB,)

    # ---- operand preparation (bf16 MXU inputs, f32 biases, padding) ----
    x_p = jnp.zeros((B_pad, F), jnp.bfloat16).at[:B].set(x.astype(jnp.bfloat16))

    w1b = w1.astype(jnp.bfloat16)
    b1f = b1.reshape(1, h1).astype(jnp.float32)

    w2b = jnp.zeros((h1, h2p), jnp.bfloat16).at[:, :h2].set(w2.astype(jnp.bfloat16))
    b2f = jnp.zeros((1, h2p), jnp.float32).at[:, :h2].set(
        b2.reshape(1, h2).astype(jnp.float32))

    w3b = jnp.zeros((h2p, cp), jnp.bfloat16).at[:h2, :n_classes].set(
        w3.astype(jnp.bfloat16))
    b3f = jnp.full((1, cp), -1e30, jnp.float32).at[:, :n_classes].set(
        b3.reshape(1, n_classes).astype(jnp.float32))

    # ---- specs ----
    resident = lambda shape: pl.BlockSpec(shape, lambda i: (0, 0))
    in_specs = [
        pl.BlockSpec((TB, F), lambda i: (i, 0)),   # activation stream
        resident((F, h1)),                         # w1 (VMEM-resident)
        resident((1, h1)),                         # b1
        resident((h1, h2p)),                       # w2
        resident((1, h2p)),                        # b2
        resident((h2p, cp)),                       # w3
        resident((1, cp)),                         # b3
    ]
    out_specs = (
        pl.BlockSpec((TB, cp), lambda i: (i, 0)),   # padded class probs
        pl.BlockSpec((TB, h2p), lambda i: (i, 0)),  # padded cls_last_layer
    )
    out_shapes = (
        jax.ShapeDtypeStruct((B_pad, cp), jnp.float32),
        jax.ShapeDtypeStruct((B_pad, h2p), jnp.float32),
    )

    flops = 2 * B_pad * (F * h1 + h1 * h2p + h2p * cp)
    bytes_accessed = (
        x_p.size * 2 + w1b.size * 2 + w2b.size * 2 + w3b.size * 2
        + (b1f.size + b2f.size + b3f.size) * 4
        + B_pad * (cp + h2p) * 4)
    cost = pl.CostEstimate(flops=flops,
                           transcendentals=B_pad * cp,
                           bytes_accessed=bytes_accessed)

    fn = pl.pallas_call(
        classifier_kernel,
        out_shape=out_shapes,
        grid_spec=pltpu.PrefetchScalarGridSpec(
            num_scalar_prefetch=0,
            grid=grid,
            in_specs=in_specs,
            out_specs=out_specs,
        ),
        compiler_params=pltpu.CompilerParams(
            dimension_semantics=("parallel",)),
        cost_estimate=cost,
    )
    cls_pad, hid_pad = fn(x_p, w1b, b1f, w2b, b2f, w3b, b3f)

    # slice away batch + lane padding
    class_ = cls_pad[:B, :n_classes]
    cls_last_layer_ = hid_pad[:B, :h2]
    return class_, cls_last_layer_


def init_params(key, n_times, n_latent, n_classes):
    """Deterministic init matching PyTorch Linear shapes (stored transposed)."""
    F = n_times * n_latent
    h1 = F // 2
    h2 = F // 4

    def linear_init(k, fan_in, fan_out):
        kw, kb = jax.random.split(k)
        bound = 1.0 / jnp.sqrt(fan_in)
        w = jax.random.uniform(kw, (fan_in, fan_out), jnp.float32, -bound, bound)
        b = jax.random.uniform(kb, (fan_out,), jnp.float32, -bound, bound)
        return w, b

    k1, k2, k3 = jax.random.split(key, 3)
    w1, b1 = linear_init(k1, F, h1)
    w2, b2 = linear_init(k2, h1, h2)
    w3, b3 = linear_init(k3, h2, n_classes)
    return (w1, b1, w2, b2, w3, b3)


def reference_forward(h, params):
    """Pure-JAX reference mirroring the kernel's bf16-in / f32-accum casting."""
    w1, b1, w2, b2, w3, b3 = params
    F = w1.shape[0]
    x = h.reshape(-1, F).astype(jnp.bfloat16)
    a1 = jnp.dot(x, w1.astype(jnp.bfloat16),
                 preferred_element_type=jnp.float32) + b1.reshape(1, -1)
    cls_last = jnp.dot(a1.astype(jnp.bfloat16), w2.astype(jnp.bfloat16),
                       preferred_element_type=jnp.float32) + b2.reshape(1, -1)
    logits = jnp.dot(cls_last.astype(jnp.bfloat16), w3.astype(jnp.bfloat16),
                     preferred_element_type=jnp.float32) + b3.reshape(1, -1)
    return jax.nn.softmax(logits, axis=1), cls_last


if __name__ == "__main__":
    # Small shapes consistent with the module: n_times=8, n_latent=32 -> F=256
    n_times, n_latent, n_classes = 8, 32, 10
    batch = 8

    key = jax.random.PRNGKey(0)
    kp, kx = jax.random.split(key)
    params = init_params(kp, n_times, n_latent, n_classes)
    h = jax.random.normal(kx, (batch, n_times, n_latent), dtype=jnp.float32)

    fwd = jax.jit(functools.partial(classifier_forward, tb_max=512))
    class_, cls_last = fwd(h, params)
    jax.block_until_ready((class_, cls_last))

    ref_class, ref_last = reference_forward(h, params)

    assert class_.shape == (batch, n_classes)
    assert cls_last.shape == (batch, (n_times * n_latent) // 4)
    # probabilities: exact-vs-approx reciprocal + MXU accumulation order
    assert jnp.allclose(class_, ref_class, atol=5e-3, rtol=1e-2)
    assert jnp.allclose(jnp.sum(class_, axis=1), 1.0, atol=5e-3)
    # hidden layer: same bf16->f32 pipeline, only accumulation order differs
    assert jnp.allclose(cls_last, ref_last, atol=2e-2, rtol=2e-2)

    print("KERNEL_OK")
</pallas_src>

<mosaic_0001>
module attributes {stable_mosaic.version = 11 : i64} {
  func.func @classifier_kernel(%arg0: i32, %arg1: memref<8x256xbf16, #tpu.memory_space<vmem>>, %arg2: memref<256x128xbf16, #tpu.memory_space<vmem>>, %arg3: memref<1x128xf32, #tpu.memory_space<vmem>>, %arg4: memref<128x128xbf16, #tpu.memory_space<vmem>>, %arg5: memref<1x128xf32, #tpu.memory_space<vmem>>, %arg6: memref<128x128xbf16, #tpu.memory_space<vmem>>, %arg7: memref<1x128xf32, #tpu.memory_space<vmem>>, %arg8: memref<8x128xf32, #tpu.memory_space<vmem>>, %arg9: memref<8x128xf32, #tpu.memory_space<vmem>>) attributes {dimension_semantics = [#tpu.dimension_semantics<parallel>], iteration_bounds = array<i64: 1>, scalar_prefetch = 0 : i64, scratch_operands = 0 : i64, tpu.core_type = #tpu.core_type<tc>, window_params = [{transform_indices = @transform_0, window_bounds = array<i64: 8, 256>}, {pipeline_mode = #tpu.pipeline_mode<synchronous>, transform_indices = @transform_1, window_bounds = array<i64: 256, 128>}, {pipeline_mode = #tpu.pipeline_mode<synchronous>, transform_indices = @transform_2, window_bounds = array<i64: 1, 128>}, {pipeline_mode = #tpu.pipeline_mode<synchronous>, transform_indices = @transform_3, window_bounds = array<i64: 128, 128>}, {pipeline_mode = #tpu.pipeline_mode<synchronous>, transform_indices = @transform_4, window_bounds = array<i64: 1, 128>}, {pipeline_mode = #tpu.pipeline_mode<synchronous>, transform_indices = @transform_5, window_bounds = array<i64: 128, 128>}, {pipeline_mode = #tpu.pipeline_mode<synchronous>, transform_indices = @transform_6, window_bounds = array<i64: 1, 128>}, {transform_indices = @transform_7, window_bounds = array<i64: 8, 128>}, {transform_indices = @transform_8, window_bounds = array<i64: 8, 128>}]} {
    %c0 = arith.constant 0 : index
    %c0_0 = arith.constant 0 : index
    %0 = vector.load %arg1[%c0, %c0_0] : memref<8x256xbf16, #tpu.memory_space<vmem>>, vector<8x256xbf16>
    %c0_1 = arith.constant 0 : index
    %c0_2 = arith.constant 0 : index
    %1 = vector.load %arg2[%c0_1, %c0_2] : memref<256x128xbf16, #tpu.memory_space<vmem>>, vector<256x128xbf16>
    %cst = arith.constant dense<0.000000e+00> : vector<8x128xf32>
    %2 = tpu.matmul %0, %1, %cst {dimension_numbers = #tpu.dot_dimension_numbers<[1], [0], [0], [1], [0, 0, 1, 1], [], []>} : vector<8x256xbf16>, vector<256x128xbf16>, vector<8x128xf32> -> vector<8x128xf32>
    %c0_3 = arith.constant 0 : index
    %c0_4 = arith.constant 0 : index
    %3 = vector.load %arg3[%c0_3, %c0_4] : memref<1x128xf32, #tpu.memory_space<vmem>>, vector<1x128xf32>
    %4 = vector.broadcast %3 : vector<1x128xf32> to vector<8x128xf32>
    %5 = arith.addf %2, %4 : vector<8x128xf32>
    %6 = arith.truncf %5 : vector<8x128xf32> to vector<8x128xbf16>
    %c0_5 = arith.constant 0 : index
    %c0_6 = arith.constant 0 : index
    %7 = vector.load %arg4[%c0_5, %c0_6] : memref<128x128xbf16, #tpu.memory_space<vmem>>, vector<128x128xbf16>
    %cst_7 = arith.constant dense<0.000000e+00> : vector<8x128xf32>
    %8 = tpu.matmul %6, %7, %cst_7 {dimension_numbers = #tpu.dot_dimension_numbers<[1], [0], [0], [1], [0, 0, 1, 1], [], []>} : vector<8x128xbf16>, vector<128x128xbf16>, vector<8x128xf32> -> vector<8x128xf32>
    %c0_8 = arith.constant 0 : index
    %c0_9 = arith.constant 0 : index
    %9 = vector.load %arg5[%c0_8, %c0_9] : memref<1x128xf32, #tpu.memory_space<vmem>>, vector<1x128xf32>
    %10 = vector.broadcast %9 : vector<1x128xf32> to vector<8x128xf32>
    %11 = arith.addf %8, %10 : vector<8x128xf32>
    %c0_10 = arith.constant 0 : index
    %c0_11 = arith.constant 0 : index
    %12 = vector.load %arg9[%c0_10, %c0_11] : memref<8x128xf32, #tpu.memory_space<vmem>>, vector<8x128xf32>
    tpu.vector_store %arg9[%c0_10, %c0_11], %11 {strides = array<i32>} : memref<8x128xf32, #tpu.memory_space<vmem>>, vector<8x128xf32>,
    %13 = arith.truncf %11 : vector<8x128xf32> to vector<8x128xbf16>
    %c0_12 = arith.constant 0 : index
    %c0_13 = arith.constant 0 : index
    %14 = vector.load %arg6[%c0_12, %c0_13] : memref<128x128xbf16, #tpu.memory_space<vmem>>, vector<128x128xbf16>
    %cst_14 = arith.constant dense<0.000000e+00> : vector<8x128xf32>
    %15 = tpu.matmul %13, %14, %cst_14 {dimension_numbers = #tpu.dot_dimension_numbers<[1], [0], [0], [1], [0, 0, 1, 1], [], []>} : vector<8x128xbf16>, vector<128x128xbf16>, vector<8x128xf32> -> vector<8x128xf32>
    %c0_15 = arith.constant 0 : index
    %c0_16 = arith.constant 0 : index
    %16 = vector.load %arg7[%c0_15, %c0_16] : memref<1x128xf32, #tpu.memory_space<vmem>>, vector<1x128xf32>
    %17 = vector.broadcast %16 : vector<1x128xf32> to vector<8x128xf32>
    %18 = arith.addf %15, %17 : vector<8x128xf32>
    %cst_17 = arith.constant dense<0xFF800000> : vector<8xf32>
    %19 = vector.multi_reduction <maximumf>, %18, %cst_17 [1] : vector<8x128xf32> to vector<8xf32>
    %20 = vector.shape_cast %19 : vector<8xf32> to vector<8x1xf32>
    %21 = vector.broadcast %20 : vector<8x1xf32> to vector<8x128xf32>
    %22 = arith.subf %18, %21 : vector<8x128xf32>
    %23 = math.exp %22 : vector<8x128xf32>
    %cst_18 = arith.constant dense<0.000000e+00> : vector<8xf32>
    %24 = vector.multi_reduction <add>, %23, %cst_18 [1] : vector<8x128xf32> to vector<8xf32>
    %25 = vector.shape_cast %24 : vector<8xf32> to vector<8x1xf32>
    %26 = tpu.reciprocal %25 {approx = true} : vector<8x1xf32> -> vector<8x1xf32>
    %27 = vector.broadcast %26 : vector<8x1xf32> to vector<8x128xf32>
    %28 = arith.mulf %23, %27 : vector<8x128xf32>
    %c0_19 = arith.constant 0 : index
    %c0_20 = arith.constant 0 : index
    %29 = vector.load %arg8[%c0_19, %c0_20] : memref<8x128xf32, #tpu.memory_space<vmem>>, vector<8x128xf32>
    tpu.vector_store %arg8[%c0_19, %c0_20], %28 {strides = array<i32>} : memref<8x128xf32, #tpu.memory_space<vmem>>, vector<8x128xf32>,
    return
  }
  func.func @transform_0(%arg0: i32) -> (i32, i32) {
    %c0_i32 = arith.constant 0 : i32
    %c0_i32_0 = arith.constant 0 : i32
    return %arg0, %c0_i32 : i32, i32
  }
  func.func @transform_1(%arg0: i32) -> (i32, i32) {
    %c0_i32 = arith.constant 0 : i32
    %c0_i32_0 = arith.constant 0 : i32
    %c0_i32_1 = arith.constant 0 : i32
    return %c0_i32, %c0_i32_0 : i32, i32
  }
  func.func @transform_2(%arg0: i32) -> (i32, i32) {
    %c0_i32 = arith.constant 0 : i32
    %c0_i32_0 = arith.constant 0 : i32
    %c0_i32_1 = arith.constant 0 : i32
    return %c0_i32, %c0_i32_0 : i32, i32
  }
  func.func @transform_3(%arg0: i32) -> (i32, i32) {
    %c0_i32 = arith.constant 0 : i32
    %c0_i32_0 = arith.constant 0 : i32
    %c0_i32_1 = arith.constant 0 : i32
    return %c0_i32, %c0_i32_0 : i32, i32
  }
  func.func @transform_4(%arg0: i32) -> (i32, i32) {
    %c0_i32 = arith.constant 0 : i32
    %c0_i32_0 = arith.constant 0 : i32
    %c0_i32_1 = arith.constant 0 : i32
    return %c0_i32, %c0_i32_0 : i32, i32
  }
  func.func @transform_5(%arg0: i32) -> (i32, i32) {
    %c0_i32 = arith.constant 0 : i32
    %c0_i32_0 = arith.constant 0 : i32
    %c0_i32_1 = arith.constant 0 : i32
    return %c0_i32, %c0_i32_0 : i32, i32
  }
  func.func @transform_6(%arg0: i32) -> (i32, i32) {
    %c0_i32 = arith.constant 0 : i32
    %c0_i32_0 = arith.constant 0 : i32
    %c0_i32_1 = arith.constant 0 : i32
    return %c0_i32, %c0_i32_0 : i32, i32
  }
  func.func @transform_7(%arg0: i32) -> (i32, i32) {
    %c0_i32 = arith.constant 0 : i32
    %c0_i32_0 = arith.constant 0 : i32
    return %arg0, %c0_i32 : i32, i32
  }
  func.func @transform_8(%arg0: i32) -> (i32, i32) {
    %c0_i32 = arith.constant 0 : i32
    %c0_i32_0 = arith.constant 0 : i32
    return %arg0, %c0_i32 : i32, i32
  }
}

</mosaic_0001>

<llo_original>
// kernel: classifier_forward.1
$region0: #{classifier_forward.1}
  #allocation0 [shape = 'u32[]', space=smem, size = 0x4, offset = 0x4, fixed_abs, tag = 'smem constant byte address 0x4 - core index']
  #allocation1 [shape = 'u32[144,128]{1,0:T(1,128)}', space=vmem, size = 0x12000, scoped, tag = 'internal scratch']
  %s0 = inlined_call_operand.vmem [shape: bf16[8,256], index: 0, kind: input, shape index: {}]
  %s1 = inlined_call_operand.vmem [shape: bf16[256,128], index: 1, kind: input, shape index: {}]
  %s2 = inlined_call_operand.vmem [shape: f32[1,128], index: 2, kind: input, shape index: {}]
  %s3 = inlined_call_operand.vmem [shape: bf16[128,128], index: 3, kind: input, shape index: {}]
  %s4 = inlined_call_operand.vmem [shape: f32[1,128], index: 4, kind: input, shape index: {}]
  %s5 = inlined_call_operand.vmem [shape: bf16[128,128], index: 5, kind: input, shape index: {}]
  %s6 = inlined_call_operand.vmem [shape: f32[1,128], index: 6, kind: input, shape index: {}]
  %s7 = inlined_call_operand.hbm [shape: f32[8,128], index: 7, kind: output, shape index: {0}]
  %s8 = inlined_call_operand.hbm [shape: f32[8,128], index: 8, kind: output, shape index: {1}]
  %9 = xla_tuple %s7, %s8
  %s10 = sld [smem:[#allocation0]]
  $region46: #{classifier_forward.1} parent=0
    _
  %s12 = ssub.s32 1, %s10
  %s13 = scalar_select 0, %s12, %s10
  $region1: #{classifier_forward.1} parent=0
    #allocation2 [shape = 'u8[4096]{0}', space=vmem, size = 0x1000, scoped, tag = 'output window, operand 0, single buffered']
    #allocation3 [shape = 's32[1]{0}', space=sflag, size = 0x4, scoped, tag = 'scoped memory for classifier_forward.1']
    #allocation4 [shape = 'u8[4096]{0}', space=vmem, size = 0x1000, scoped, tag = 'output window, operand 1, single buffered']
    #allocation5 [shape = 's32[1]{0}', space=sflag, size = 0x4, scoped, tag = 'scoped memory for classifier_forward.1']
    %14 = vsyncpa [#allocation3], 0
    %15 = vsyncpa [#allocation5], 0
    // Predicated region
    $region2: #{classifier_forward.1} parent=1 // pred_check
      _
    $region3: #{classifier_forward.1} parent=1 // pred_check_branch
      %17 = sbr.rel (0) target = $region5
    $region4: #{classifier_forward.1} parent=1 // pred_region
      _
    $region5: #{classifier_forward.1} parent=1 // pred_fallthru
      _
    // Predicated region
    $region6: #{classifier_forward.1} parent=1 // pred_check
      _
    $region7: #{classifier_forward.1} parent=1 // pred_check_branch
      %19 = sbr.rel (0) target = $region9
    $region8: #{classifier_forward.1} parent=1 // pred_region
      _
    $region9: #{classifier_forward.1} parent=1 // pred_fallthru
      _
    // Predicated region
    $region10: #{classifier_forward.1} parent=1 // pred_check
      _
    $region11: #{classifier_forward.1} parent=1 // pred_check_branch
      %21 = sbr.rel (0) target = $region13
    $region12: #{classifier_forward.1} parent=1 // pred_region
      _
    $region13: #{classifier_forward.1} parent=1 // pred_fallthru
      _
    // Predicated region
    $region14: #{classifier_forward.1} parent=1 // pred_check
      _
    $region15: #{classifier_forward.1} parent=1 // pred_check_branch
      %23 = sbr.rel (0) target = $region17
    $region16: #{classifier_forward.1} parent=1 // pred_region
      _
    $region17: #{classifier_forward.1} parent=1 // pred_fallthru
      _
    // Predicated region
    $region18: #{classifier_forward.1} parent=1 // pred_check
      _
    $region19: #{classifier_forward.1} parent=1 // pred_check_branch
      %25 = sbr.rel (0) target = $region21
    $region20: #{classifier_forward.1} parent=1 // pred_region
      _
    $region21: #{classifier_forward.1} parent=1 // pred_fallthru
      _
    // Predicated region
    $region22: #{classifier_forward.1} parent=1 // pred_check
      _
    $region23: #{classifier_forward.1} parent=1 // pred_check_branch
      %27 = sbr.rel (0) target = $region25
    $region24: #{classifier_forward.1} parent=1 // pred_region
      _
    $region25: #{classifier_forward.1} parent=1 // pred_fallthru
      _
    // Predicated region
    $region26: #{classifier_forward.1} parent=1 // pred_check
      _
    $region27: #{classifier_forward.1} parent=1 // pred_check_branch
      %29 = sbr.rel (0) target = $region29
    $region28: #{classifier_forward.1} parent=1 // pred_region
      _
    $region29: #{classifier_forward.1} parent=1 // pred_fallthru
      _
    %v31 = vld [vmem:[%s0] sm:$0xff]
    %v32 = vld [vmem:[%s1] sm:$0xf]
    %v33 = vld [vmem:[%s1 + $0x4] sm:$0xf]
    %v34 = vld [vmem:[%s1 + $0x8] sm:$0xf]
    %v35 = vld [vmem:[%s1 + $0xc] sm:$0xf]
    %v36 = vld [vmem:[%s1 + $0x10] sm:$0xf]
    %v37 = vld [vmem:[%s1 + $0x14] sm:$0xf]
    %v38 = vld [vmem:[%s1 + $0x18] sm:$0xf]
    %v39 = vld [vmem:[%s1 + $0x1c] sm:$0xf]
    %v40 = vld [vmem:[%s1 + $0x20] sm:$0xf]
    %v41 = vld [vmem:[%s1 + $0x24] sm:$0xf]
    %v42 = vld [vmem:[%s1 + $0x28] sm:$0xf]
    %v43 = vld [vmem:[%s1 + $0x2c] sm:$0xf]
    %v44 = vld [vmem:[%s1 + $0x30] sm:$0xf]
    %v45 = vld [vmem:[%s1 + $0x34] sm:$0xf]
    %v46 = vld [vmem:[%s1 + $0x38] sm:$0xf]
    %v47 = vld [vmem:[%s1 + $0x3c] sm:$0xf]
    %v48 = vld [vmem:[%s1 + $0x40] sm:$0xf]
    %v49 = vld [vmem:[%s1 + $0x44] sm:$0xf]
    %v50 = vld [vmem:[%s1 + $0x48] sm:$0xf]
    %v51 = vld [vmem:[%s1 + $0x4c] sm:$0xf]
    %v52 = vld [vmem:[%s1 + $0x50] sm:$0xf]
    %v53 = vld [vmem:[%s1 + $0x54] sm:$0xf]
    %v54 = vld [vmem:[%s1 + $0x58] sm:$0xf]
    %v55 = vld [vmem:[%s1 + $0x5c] sm:$0xf]
    %v56 = vld [vmem:[%s1 + $0x60] sm:$0xf]
    %v57 = vld [vmem:[%s1 + $0x64] sm:$0xf]
    %v58 = vld [vmem:[%s1 + $0x68] sm:$0xf]
    %v59 = vld [vmem:[%s1 + $0x6c] sm:$0xf]
    %v60 = vld [vmem:[%s1 + $0x70] sm:$0xf]
    %v61 = vld [vmem:[%s1 + $0x74] sm:$0xf]
    %v62 = vld [vmem:[%s1 + $0x78] sm:$0xf]
    %v63 = vld [vmem:[%s1 + $0x7c] sm:$0xf]
    %v64 = vld [vmem:[%s2] sm:$0x1]
    %v66 = vlaneseq
    %v67 = vshrl.u32 %v66, 7
    %v68 = vsub.s32 0, %v67
    %v69 = vrot.slane %v64, %v68
    %v72 = vunpack.c.l.b16 %v31
    %v73 = vunpack.c.h.b16 %v31
    %v74 = vpack.c.b16 %v72, %v72
    %v75 = vpack.c.b16 %v73, %v73
    %v110 = vunpack.c.l.b16 %v32
    %v111 = vunpack.c.l.b16 %v33
    %v112 = vunpack.c.l.b16 %v34
    %v113 = vunpack.c.l.b16 %v35
    %v114 = vunpack.c.l.b16 %v36
    %v115 = vunpack.c.l.b16 %v37
    %v116 = vunpack.c.l.b16 %v38
    %v117 = vunpack.c.l.b16 %v39
    %v118 = vunpack.c.l.b16 %v40
    %v119 = vunpack.c.l.b16 %v41
    %v120 = vunpack.c.l.b16 %v42
    %v121 = vunpack.c.l.b16 %v43
    %v122 = vunpack.c.l.b16 %v44
    %v123 = vunpack.c.l.b16 %v45
    %v124 = vunpack.c.l.b16 %v46
    %v125 = vunpack.c.l.b16 %v47
    %v126 = vunpack.c.l.b16 %v48
    %v127 = vunpack.c.l.b16 %v49
    %v128 = vunpack.c.l.b16 %v50
    %v129 = vunpack.c.l.b16 %v51
    %v130 = vunpack.c.l.b16 %v52
    %v131 = vunpack.c.l.b16 %v53
    %v132 = vunpack.c.l.b16 %v54
    %v133 = vunpack.c.l.b16 %v55
    %v134 = vunpack.c.l.b16 %v56
    %v135 = vunpack.c.l.b16 %v57
    %v136 = vunpack.c.l.b16 %v58
    %v137 = vunpack.c.l.b16 %v59
    %v138 = vunpack.c.l.b16 %v60
    %v139 = vunpack.c.l.b16 %v61
    %v140 = vunpack.c.l.b16 %v62
    %v141 = vunpack.c.l.b16 %v63
    %v142 = vpack.c.b16 %v111, %v110
    %v143 = vpack.c.b16 %v113, %v112
    %v144 = vpack.c.b16 %v115, %v114
    %v145 = vpack.c.b16 %v117, %v116
    %v146 = vpack.c.b16 %v119, %v118
    %v147 = vpack.c.b16 %v121, %v120
    %v148 = vpack.c.b16 %v123, %v122
    %v149 = vpack.c.b16 %v125, %v124
    %v150 = vpack.c.b16 %v127, %v126
    %v151 = vpack.c.b16 %v129, %v128
    %v152 = vpack.c.b16 %v131, %v130
    %v153 = vpack.c.b16 %v133, %v132
    %v154 = vpack.c.b16 %v135, %v134
    %v155 = vpack.c.b16 %v137, %v136
    %v156 = vpack.c.b16 %v139, %v138
    %v157 = vpack.c.b16 %v141, %v140
    %174 = vmatprep.subr.bf16.mxu0 0
    %175 = vmatpush1.bf16.msra.mxu0 %v142
    %176 = vmatprep.subr.bf16.mxu0 0
    %177 = vmatpush1.bf16.msra.mxu0 %v143
    %178 = vmatprep.subr.bf16.mxu0 0
    %179 = vmatpush1.bf16.msra.mxu0 %v144
    %180 = vmatprep.subr.bf16.mxu0 0
    %181 = vmatpush1.bf16.msra.mxu0 %v145
    %182 = vmatprep.subr.bf16.mxu0 0
    %183 = vmatpush1.bf16.msra.mxu0 %v146
    %184 = vmatprep.subr.bf16.mxu0 0
    %185 = vmatpush1.bf16.msra.mxu0 %v147
    %186 = vmatprep.subr.bf16.mxu0 0
    %187 = vmatpush1.bf16.msra.mxu0 %v148
    %188 = vmatprep.subr.bf16.mxu0 0
    %189 = vmatpush1.bf16.msra.mxu0 %v149
    %190 = vmatprep.subr.bf16.mxu0 0
    %191 = vmatpush1.bf16.msra.mxu0 %v150
    %192 = vmatprep.subr.bf16.mxu0 0
    %193 = vmatpush1.bf16.msra.mxu0 %v151
    %194 = vmatprep.subr.bf16.mxu0 0
    %195 = vmatpush1.bf16.msra.mxu0 %v152
    %196 = vmatprep.subr.bf16.mxu0 0
    %197 = vmatpush1.bf16.msra.mxu0 %v153
    %198 = vmatprep.subr.bf16.mxu0 0
    %199 = vmatpush1.bf16.msra.mxu0 %v154
    %200 = vmatprep.subr.bf16.mxu0 0
    %201 = vmatpush1.bf16.msra.mxu0 %v155
    %202 = vmatprep.subr.bf16.mxu0 0
    %203 = vmatpush1.bf16.msra.mxu0 %v156
    %204 = vmatprep.subr.bf16.mxu0 0
    %205 = vmatpush1.bf16.msra.mxu0 %v157
    %206 = vmatprep.mubr.bf16.mxu0 %v75
    %207 = vmatmul.mubr.bf16.gmra.mrb[0].mxu0 %v74
    %v208 = vpop.f32.mrb[0].mxu0
    %v209 = vadd.f32 %v69, %v208
    %v210 = vpop.f32.mrb[0].mxu0
    %v211 = vpop.f32.mrb[0].mxu0
    %v212 = vpop.f32.mrb[0].mxu0
    %213 = vdwg.mxu0
    %v214 = vpack.c.bf16 %v209, %v209
    %v215 = vld [vmem:[%s3] sm:$0xf]
    %v216 = vld [vmem:[%s3 + $0x4] sm:$0xf]
    %v217 = vld [vmem:[%s3 + $0x8] sm:$0xf]
    %v218 = vld [vmem:[%s3 + $0xc] sm:$0xf]
    %v219 = vld [vmem:[%s3 + $0x10] sm:$0xf]
    %v220 = vld [vmem:[%s3 + $0x14] sm:$0xf]
    %v221 = vld [vmem:[%s3 + $0x18] sm:$0xf]
    %v222 = vld [vmem:[%s3 + $0x1c] sm:$0xf]
    %v223 = vld [vmem:[%s3 + $0x20] sm:$0xf]
    %v224 = vld [vmem:[%s3 + $0x24] sm:$0xf]
    %v225 = vld [vmem:[%s3 + $0x28] sm:$0xf]
    %v226 = vld [vmem:[%s3 + $0x2c] sm:$0xf]
    %v227 = vld [vmem:[%s3 + $0x30] sm:$0xf]
    %v228 = vld [vmem:[%s3 + $0x34] sm:$0xf]
    %v229 = vld [vmem:[%s3 + $0x38] sm:$0xf]
    %v230 = vld [vmem:[%s3 + $0x3c] sm:$0xf]
    %v231 = vld [vmem:[%s4] sm:$0x1]
    %v233 = vlaneseq
    %v234 = vshrl.u32 %v233, 7
    %v235 = vsub.s32 0, %v234
    %v236 = vrot.slane %v231, %v235
    %v254 = vunpack.c.l.b16 %v215
    %v255 = vunpack.c.l.b16 %v216
    %v256 = vunpack.c.l.b16 %v217
    %v257 = vunpack.c.l.b16 %v218
    %v258 = vunpack.c.l.b16 %v219
    %v259 = vunpack.c.l.b16 %v220
    %v260 = vunpack.c.l.b16 %v221
    %v261 = vunpack.c.l.b16 %v222
    %v262 = vunpack.c.l.b16 %v223
    %v263 = vunpack.c.l.b16 %v224
    %v264 = vunpack.c.l.b16 %v225
    %v265 = vunpack.c.l.b16 %v226
    %v266 = vunpack.c.l.b16 %v227
    %v267 = vunpack.c.l.b16 %v228
    %v268 = vunpack.c.l.b16 %v229
    %v269 = vunpack.c.l.b16 %v230
    %v270 = vpack.c.b16 %v255, %v254
    %v271 = vpack.c.b16 %v257, %v256
    %v272 = vpack.c.b16 %v259, %v258
    %v273 = vpack.c.b16 %v261, %v260
    %v274 = vpack.c.b16 %v263, %v262
    %v275 = vpack.c.b16 %v265, %v264
    %v276 = vpack.c.b16 %v267, %v266
    %v277 = vpack.c.b16 %v269, %v268
    %286 = vmatprep.subr.bf16.mxu0 0
    %287 = vmatpush1.bf16.msra.mxu0 %v270
    %288 = vmatprep.subr.bf16.mxu0 0
    %289 = vmatpush1.bf16.msra.mxu0 %v271
    %290 = vmatprep.subr.bf16.mxu0 0
    %291 = vmatpush1.bf16.msra.mxu0 %v272
    %292 = vmatprep.subr.bf16.mxu0 0
    %293 = vmatpush1.bf16.msra.mxu0 %v273
    %294 = vmatprep.subr.bf16.mxu0 0
    %295 = vmatpush1.bf16.msra.mxu0 %v274
    %296 = vmatprep.subr.bf16.mxu0 0
    %297 = vmatpush1.bf16.msra.mxu0 %v275
    %298 = vmatprep.subr.bf16.mxu0 0
    %299 = vmatpush1.bf16.msra.mxu0 %v276
    %300 = vmatprep.subr.bf16.mxu0 0
    %301 = vmatpush1.bf16.msra.mxu0 %v277
    %302 = vmatprep.subr.bf16.mxu0 0
    %303 = vmatpush1.bf16.msra.mxu0 0
    %304 = vmatprep.subr.bf16.mxu0 0
    %305 = vmatpush1.bf16.msra.mxu0 0
    %306 = vmatprep.subr.bf16.mxu0 0
    %307 = vmatpush1.bf16.msra.mxu0 0
    %308 = vmatprep.subr.bf16.mxu0 0
    %309 = vmatpush1.bf16.msra.mxu0 0
    %310 = vmatprep.subr.bf16.mxu0 0
    %311 = vmatpush1.bf16.msra.mxu0 0
    %312 = vmatprep.subr.bf16.mxu0 0
    %313 = vmatpush1.bf16.msra.mxu0 0
    %314 = vmatprep.subr.bf16.mxu0 0
    %315 = vmatpush1.bf16.msra.mxu0 0
    %316 = vmatprep.subr.bf16.mxu0 0
    %317 = vmatpush1.bf16.msra.mxu0 0
    %318 = vmatprep.mubr.bf16.mxu0 0
    %319 = vmatmul.mubr.bf16.gmra.mrb[0].mxu0 %v214
    %v320 = vpop.f32.mrb[0].mxu0
    %v321 = vadd.f32 %v236, %v320
    %v322 = vpop.f32.mrb[0].mxu0
    %v323 = vpop.f32.mrb[0].mxu0
    %v324 = vpop.f32.mrb[0].mxu0
    %325 = vdwg.mxu0
    %326 = vst [vmem:[#allocation4] sm:$0xff] %v321
    %v327 = vpack.c.bf16 %v321, %v321
    %v328 = vld [vmem:[%s5] sm:$0xf]
    %v329 = vld [vmem:[%s5 + $0x4] sm:$0xf]
    %v330 = vld [vmem:[%s5 + $0x8] sm:$0xf]
    %v331 = vld [vmem:[%s5 + $0xc] sm:$0xf]
    %v332 = vld [vmem:[%s5 + $0x10] sm:$0xf]
    %v333 = vld [vmem:[%s5 + $0x14] sm:$0xf]
    %v334 = vld [vmem:[%s5 + $0x18] sm:$0xf]
    %v335 = vld [vmem:[%s5 + $0x1c] sm:$0xf]
    %v336 = vld [vmem:[%s5 + $0x20] sm:$0xf]
    %v337 = vld [vmem:[%s5 + $0x24] sm:$0xf]
    %v338 = vld [vmem:[%s5 + $0x28] sm:$0xf]
    %v339 = vld [vmem:[%s5 + $0x2c] sm:$0xf]
    %v340 = vld [vmem:[%s5 + $0x30] sm:$0xf]
    %v341 = vld [vmem:[%s5 + $0x34] sm:$0xf]
    %v342 = vld [vmem:[%s5 + $0x38] sm:$0xf]
    %v343 = vld [vmem:[%s5 + $0x3c] sm:$0xf]
    %v344 = vld [vmem:[%s6] sm:$0x1]
    %v346 = vlaneseq
    %v347 = vshrl.u32 %v346, 7
    %v348 = vsub.s32 0, %v347
    %v349 = vrot.slane %v344, %v348
    %v367 = vunpack.c.l.b16 %v328
    %v368 = vunpack.c.l.b16 %v329
    %v369 = vunpack.c.l.b16 %v330
    %v370 = vunpack.c.l.b16 %v331
    %v371 = vunpack.c.l.b16 %v332
    %v372 = vunpack.c.l.b16 %v333
    %v373 = vunpack.c.l.b16 %v334
    %v374 = vunpack.c.l.b16 %v335
    %v375 = vunpack.c.l.b16 %v336
    %v376 = vunpack.c.l.b16 %v337
    %v377 = vunpack.c.l.b16 %v338
    %v378 = vunpack.c.l.b16 %v339
    %v379 = vunpack.c.l.b16 %v340
    %v380 = vunpack.c.l.b16 %v341
    %v381 = vunpack.c.l.b16 %v342
    %v382 = vunpack.c.l.b16 %v343
    %v383 = vpack.c.b16 %v368, %v367
    %v384 = vpack.c.b16 %v370, %v369
    %v385 = vpack.c.b16 %v372, %v371
    %v386 = vpack.c.b16 %v374, %v373
    %v387 = vpack.c.b16 %v376, %v375
    %v388 = vpack.c.b16 %v378, %v377
    %v389 = vpack.c.b16 %v380, %v379
    %v390 = vpack.c.b16 %v382, %v381
    %399 = vmatprep.subr.bf16.mxu0 0
    %400 = vmatpush1.bf16.msra.mxu0 %v383
    %401 = vmatprep.subr.bf16.mxu0 0
    %402 = vmatpush1.bf16.msra.mxu0 %v384
    %403 = vmatprep.subr.bf16.mxu0 0
    %404 = vmatpush1.bf16.msra.mxu0 %v385
    %405 = vmatprep.subr.bf16.mxu0 0
    %406 = vmatpush1.bf16.msra.mxu0 %v386
    %407 = vmatprep.subr.bf16.mxu0 0
    %408 = vmatpush1.bf16.msra.mxu0 %v387
    %409 = vmatprep.subr.bf16.mxu0 0
    %410 = vmatpush1.bf16.msra.mxu0 %v388
    %411 = vmatprep.subr.bf16.mxu0 0
    %412 = vmatpush1.bf16.msra.mxu0 %v389
    %413 = vmatprep.subr.bf16.mxu0 0
    %414 = vmatpush1.bf16.msra.mxu0 %v390
    %415 = vmatprep.subr.bf16.mxu0 0
    %416 = vmatpush1.bf16.msra.mxu0 0
    %417 = vmatprep.subr.bf16.mxu0 0
    %418 = vmatpush1.bf16.msra.mxu0 0
    %419 = vmatprep.subr.bf16.mxu0 0
    %420 = vmatpush1.bf16.msra.mxu0 0
    %421 = vmatprep.subr.bf16.mxu0 0
    %422 = vmatpush1.bf16.msra.mxu0 0
    %423 = vmatprep.subr.bf16.mxu0 0
    %424 = vmatpush1.bf16.msra.mxu0 0
    %425 = vmatprep.subr.bf16.mxu0 0
    %426 = vmatpush1.bf16.msra.mxu0 0
    %427 = vmatprep.subr.bf16.mxu0 0
    %428 = vmatpush1.bf16.msra.mxu0 0
    %429 = vmatprep.subr.bf16.mxu0 0
    %430 = vmatpush1.bf16.msra.mxu0 0
    %431 = vmatprep.mubr.bf16.mxu0 0
    %432 = vmatmul.mubr.bf16.gmra.mrb[0].mxu0 %v327
    %v433 = vpop.f32.mrb[0].mxu0
    %v434 = vadd.f32 %v349, %v433
    %v435 = vpop.f32.mrb[0].mxu0
    %v436 = vpop.f32.mrb[0].mxu0
    %v437 = vpop.f32.mrb[0].mxu0
    %438 = vdwg.mxu0
    %439 = vmax.xlane.f32.xlu0 %v434
    %v440 = vpop.xlane.xlu0 %439
    %v441 = vsub.f32 %v434, %v440
    %v442 = vmul.f32 %v441, 1.442695
    %v443 = vpow.pop %v442
    %444 = vadd.xlane.f32.xlu0 %v443
    %v445 = vpop.xlane.xlu0 %444
    %v446 = vrcp.pop %v445
    %v447 = vmul.f32 %v443, %v446
    %448 = vst [vmem:[#allocation2] sm:$0xff] %v447
    // Predicated region
    $region30: #{classifier_forward.1} parent=1 // pred_check
      _
    $region31: #{classifier_forward.1} parent=1 // pred_check_branch
      %450 = sbr.rel (0) target = $region33
    $region32: #{classifier_forward.1} parent=1 // pred_region
      %s452 = ssub.s32 128, 128
      %453 = vsyncadd [#allocation3], %s452
      %s455 = sshll.u32 [#allocation2], 4
      %s456 = int_to_ptr.vmem [resolvable:$true] %s455
      %458 = dma.vmem_to_hbm [thread:$0]  %s456, 128, %s7, [#allocation3]
    $region33: #{classifier_forward.1} parent=1 // pred_fallthru
      _
    // Predicated region
    $region34: #{classifier_forward.1} parent=1 // pred_check
      _
    $region35: #{classifier_forward.1} parent=1 // pred_check_branch
      %460 = sbr.rel (0) target = $region37
    $region36: #{classifier_forward.1} parent=1 // pred_region
      %s462 = ssub.s32 128, 128
      %463 = vsyncadd [#allocation5], %s462
      %s465 = sshll.u32 [#allocation4], 4
      %s466 = int_to_ptr.vmem [resolvable:$true] %s465
      %468 = dma.vmem_to_hbm [thread:$0]  %s466, 128, %s8, [#allocation5]
    $region37: #{classifier_forward.1} parent=1 // pred_fallthru
      _
    // Predicated region
    $region38: #{classifier_forward.1} parent=1 // pred_check
      _
    $region39: #{classifier_forward.1} parent=1 // pred_check_branch
      %470 = sbr.rel (0) target = $region41
    $region40: #{classifier_forward.1} parent=1 // pred_region
      %471 = dma.done [#allocation3], 128
    $region41: #{classifier_forward.1} parent=1 // pred_fallthru
      _
    // Predicated region
    $region42: #{classifier_forward.1} parent=1 // pred_check
      _
    $region43: #{classifier_forward.1} parent=1 // pred_check_branch
      %473 = sbr.rel (0) target = $region45
    $region44: #{classifier_forward.1} parent=1 // pred_region
      %474 = dma.done [#allocation5], 128
    $region45: #{classifier_forward.1} parent=1 // pred_fallthru
      _
    %475 = vsyncpa [#allocation3], 1
    %476 = vsyncpa [#allocation5], 1

</llo_original>
